<compile_context>
chip_gen: v6e
topology: v6e:2x2x1
jax: 0.10.0
libtpu: 0.0.40
codegen_flags: <defaults>
</compile_context>

<pallas_src>
import jax
import jax.numpy as jnp
from jax.experimental import pallas as pl
from jax.experimental.pallas import tpu as pltpu


def _round_up(x, m):
    return ((x + m - 1) // m) * m


def _largest_tile(padded_dim, align, cap):
    """Largest divisor of padded_dim that is a multiple of `align` and <= cap."""
    cap = max(align, min(cap, padded_dim))
    best = align
    d = align
    while d <= cap:
        if padded_dim % d == 0:
            best = d
        d += align
    return best


# ---------------------------------------------------------------------------
# Kernels
# ---------------------------------------------------------------------------

def _linear_kernel_single_k(x_ref, w_ref, b_ref, o_ref):
    # Whole K fits in one tile: no accumulator scratch, bias fused into epilogue.
    o_ref[...] = (
        jnp.dot(x_ref[...], w_ref[...], preferred_element_type=jnp.float32)
        + b_ref[...]
    ).astype(o_ref.dtype)


def _linear_kernel_multi_k(x_ref, w_ref, b_ref, o_ref, acc_ref):
    # x_ref: (tm, tk), w_ref: (tk, tn), b_ref: (1, tn) f32, o_ref: (tm, tn)
    # Grid axis 2 iterates K tiles (reduction, last); acc lives in VMEM scratch.
    k = pl.program_id(2)
    partial = jnp.dot(x_ref[...], w_ref[...], preferred_element_type=jnp.float32)

    @pl.when(k == 0)
    def _init():
        # Fuse bias into the first matmul result (no separate broadcast+add).
        acc_ref[...] = partial + b_ref[...]

    @pl.when(k > 0)
    def _accumulate():
        acc_ref[...] += partial

    @pl.when(k == pl.num_programs(2) - 1)
    def _store():
        o_ref[...] = acc_ref[...].astype(o_ref.dtype)


# ---------------------------------------------------------------------------
# Wrappers
# ---------------------------------------------------------------------------

def prepare_linear_params(weight, bias, *, compute_dtype=None):
    """One-time parameter prep (hoisted out of the per-call path).

    weight: (output_size, input_size)  [PyTorch nn.Linear layout]
    bias:   (output_size,)
    Returns (w_padded (K_pad, N_pad), b_padded (1, N_pad) f32, output_size).
    """
    output_size, input_size = weight.shape
    k_pad = _round_up(input_size, 128)
    n_pad = _round_up(output_size, 128)

    w_t = weight.T  # (K, N): canonical MXU feed, lane-dense outputs
    if compute_dtype is not None:
        w_t = w_t.astype(compute_dtype)

    w_p = jnp.pad(w_t, ((0, k_pad - input_size), (0, n_pad - output_size)))
    b_p = jnp.pad(bias.astype(jnp.float32),
                  (0, n_pad - output_size)).reshape(1, n_pad)
    return w_p, b_p, output_size


def linear_forward(x, w_padded, b_padded, output_size, *,
                   compute_dtype=None, tm_max=512, tn_max=512, tk_max=1024):
    """y = x @ W.T + b using the pre-padded (K_pad, N_pad) weight."""
    batch, input_size = x.shape
    k_pad, n_pad = w_padded.shape
    out_dtype = x.dtype
    if compute_dtype is not None:
        x = x.astype(compute_dtype)

    # Pad-first: only the activation is padded per call (M to 8, K to k_pad).
    m_pad = _round_up(batch, 8)
    x_p = jnp.pad(x, ((0, m_pad - batch), (0, k_pad - input_size)))

    # Tile-second: largest divisors of the padded dims under the VMEM caps.
    tm = _largest_tile(m_pad, 8, tm_max)
    tn = _largest_tile(n_pad, 128, tn_max)
    tk = _largest_tile(k_pad, 128, tk_max)

    # v7x megacore: guarantee >= 2 blocks on the 'parallel' axes when possible
    # so the second TensorCore has work (no effect on single-TC v5e/v6e).
    if (m_pad // tm) * (n_pad // tn) < 2:
        if n_pad >= 2 * 128:
            tn = _largest_tile(n_pad, 128, n_pad // 2)
        elif m_pad >= 2 * 8:
            tm = _largest_tile(m_pad, 8, m_pad // 2)

    grid_m, grid_n, grid_k = m_pad // tm, n_pad // tn, k_pad // tk

    x_itemsize = jnp.dtype(x_p.dtype).itemsize
    w_itemsize = jnp.dtype(w_padded.dtype).itemsize
    out_itemsize = jnp.dtype(out_dtype).itemsize

    # Streaming-aware advisory cost: W re-read per M tile, x per N tile.
    flops = 2 * m_pad * n_pad * k_pad
    bytes_accessed = (
        x_p.size * x_itemsize * grid_n
        + w_padded.size * w_itemsize * grid_m
        + b_padded.size * 4 * grid_m
        + m_pad * n_pad * out_itemsize
    )
    cost = pl.CostEstimate(flops=flops, transcendentals=0,
                           bytes_accessed=bytes_accessed)

    # Double-buffered VMEM footprint (+ f32 accumulator when multi-K); set the
    # scoped limit explicitly with headroom, well under v7x's 64 MiB physical.
    vmem_bytes = 2 * (tm * tk * x_itemsize + tk * tn * w_itemsize
                      + tn * 4 + tm * tn * out_itemsize)
    if grid_k > 1:
        vmem_bytes += tm * tn * 4
    vmem_limit = int(min(max(2 * vmem_bytes, 32 << 20), 48 << 20))

    if grid_k == 1:
        # Fast path: single K tile -> 2-D grid, no scratch, no predication.
        out_padded = pl.pallas_call(
            _linear_kernel_single_k,
            out_shape=jax.ShapeDtypeStruct((m_pad, n_pad), out_dtype),
            grid=(grid_m, grid_n),
            in_specs=[
                pl.BlockSpec((tm, tk), lambda i, j: (i, 0)),   # x tile
                pl.BlockSpec((tk, tn), lambda i, j: (0, j)),   # W^T tile
                pl.BlockSpec((1, tn), lambda i, j: (0, j)),    # bias tile
            ],
            out_specs=pl.BlockSpec((tm, tn), lambda i, j: (i, j)),
            compiler_params=pltpu.CompilerParams(
                dimension_semantics=("parallel", "parallel"),
                vmem_limit_bytes=vmem_limit,
            ),
            cost_estimate=cost,
        )(x_p, w_padded, b_padded)
    else:
        out_padded = pl.pallas_call(
            _linear_kernel_multi_k,
            out_shape=jax.ShapeDtypeStruct((m_pad, n_pad), out_dtype),
            grid=(grid_m, grid_n, grid_k),
            in_specs=[
                pl.BlockSpec((tm, tk), lambda i, j, k: (i, k)),   # x tile
                pl.BlockSpec((tk, tn), lambda i, j, k: (k, j)),   # W^T tile
                pl.BlockSpec((1, tn), lambda i, j, k: (0, j)),    # bias tile
            ],
            out_specs=pl.BlockSpec((tm, tn), lambda i, j, k: (i, j)),
            scratch_shapes=[pltpu.VMEM((tm, tn), jnp.float32)],
            compiler_params=pltpu.CompilerParams(
                dimension_semantics=("parallel", "parallel", "arbitrary"),
                vmem_limit_bytes=vmem_limit,
            ),
            cost_estimate=cost,
        )(x_p, w_padded, b_padded)

    return out_padded[:batch, :output_size]


def simple_neural_network(x, weight, bias, *, compute_dtype=None, **tile_kwargs):
    """Convenience wrapper matching SimpleNeuralNetwork.forward.

    In real use, call prepare_linear_params() once and reuse the padded weight
    across forward calls (that's the whole point of hoisting it).
    """
    w_p, b_p, output_size = prepare_linear_params(
        weight, bias, compute_dtype=compute_dtype)
    return linear_forward(x, w_p, b_p, output_size,
                          compute_dtype=compute_dtype, **tile_kwargs)


if __name__ == "__main__":
    key = jax.random.PRNGKey(0)

    # --- Check 1: small shapes, single-K fast path (demo sizes) -------------
    input_size, output_size, batch = 32, 16, 8
    kx, kw, kb = jax.random.split(key, 3)
    x = jax.random.normal(kx, (batch, input_size), dtype=jnp.float32)
    bound = 1.0 / (input_size ** 0.5)
    weight = jax.random.uniform(kw, (output_size, input_size), dtype=jnp.float32,
                                minval=-bound, maxval=bound)
    bias = jax.random.uniform(kb, (output_size,), dtype=jnp.float32,
                              minval=-bound, maxval=bound)

    out = jax.block_until_ready(simple_neural_network(x, weight, bias))
    ref = x @ weight.T + bias
    assert out.shape == (batch, output_size)
    assert jnp.allclose(out, ref, atol=1e-5, rtol=1e-5)

    # --- Check 2: force the multi-K accumulation path (tk_max=128) ----------
    in2, out2, batch2 = 300, 200, 20
    kx2, kw2, kb2 = jax.random.split(jax.random.PRNGKey(1), 3)
    x2 = jax.random.normal(kx2, (batch2, in2), dtype=jnp.float32)
    bound2 = 1.0 / (in2 ** 0.5)
    w2 = jax.random.uniform(kw2, (out2, in2), dtype=jnp.float32,
                            minval=-bound2, maxval=bound2)
    b2 = jax.random.uniform(kb2, (out2,), dtype=jnp.float32,
                            minval=-bound2, maxval=bound2)

    got2 = jax.block_until_ready(
        simple_neural_network(x2, w2, b2, tk_max=128, tn_max=128))
    ref2 = x2 @ w2.T + b2
    assert got2.shape == (batch2, out2)
    assert jnp.allclose(got2, ref2, atol=1e-4, rtol=1e-4)

    print("KERNEL_OK")
</pallas_src>

<mosaic_0001>
module attributes {stable_mosaic.version = 11 : i64} {
  func.func @_linear_kernel_single_k(%arg0: i32, %arg1: i32, %arg2: memref<8x128xf32, #tpu.memory_space<vmem>>, %arg3: memref<128x128xf32, #tpu.memory_space<vmem>>, %arg4: memref<1x128xf32, #tpu.memory_space<vmem>>, %arg5: memref<8x128xf32, #tpu.memory_space<vmem>>) attributes {dimension_semantics = [#tpu.dimension_semantics<parallel>, #tpu.dimension_semantics<parallel>], iteration_bounds = array<i64: 1, 1>, scalar_prefetch = 0 : i64, scratch_operands = 0 : i64, tpu.core_type = #tpu.core_type<tc>, window_params = [{transform_indices = @transform_0, window_bounds = array<i64: 8, 128>}, {transform_indices = @transform_1, window_bounds = array<i64: 128, 128>}, {transform_indices = @transform_2, window_bounds = array<i64: 1, 128>}, {transform_indices = @transform_3, window_bounds = array<i64: 8, 128>}]} {
    %c0 = arith.constant 0 : index
    %c0_0 = arith.constant 0 : index
    %0 = vector.load %arg2[%c0, %c0_0] : memref<8x128xf32, #tpu.memory_space<vmem>>, vector<8x128xf32>
    %c0_1 = arith.constant 0 : index
    %c0_2 = arith.constant 0 : index
    %1 = vector.load %arg3[%c0_1, %c0_2] : memref<128x128xf32, #tpu.memory_space<vmem>>, vector<128x128xf32>
    %cst = arith.constant dense<0.000000e+00> : vector<8x128xf32>
    %2 = tpu.matmul %0, %1, %cst {dimension_numbers = #tpu.dot_dimension_numbers<[1], [0], [0], [1], [0, 0, 1, 1], [], []>} : vector<8x128xf32>, vector<128x128xf32>, vector<8x128xf32> -> vector<8x128xf32>
    %c0_3 = arith.constant 0 : index
    %c0_4 = arith.constant 0 : index
    %3 = vector.load %arg4[%c0_3, %c0_4] : memref<1x128xf32, #tpu.memory_space<vmem>>, vector<1x128xf32>
    %4 = vector.broadcast %3 : vector<1x128xf32> to vector<8x128xf32>
    %5 = arith.addf %2, %4 : vector<8x128xf32>
    %c0_5 = arith.constant 0 : index
    %c0_6 = arith.constant 0 : index
    %6 = vector.load %arg5[%c0_5, %c0_6] : memref<8x128xf32, #tpu.memory_space<vmem>>, vector<8x128xf32>
    tpu.vector_store %arg5[%c0_5, %c0_6], %5 {strides = array<i32>} : memref<8x128xf32, #tpu.memory_space<vmem>>, vector<8x128xf32>,
    return
  }
  func.func @transform_0(%arg0: i32, %arg1: i32) -> (i32, i32) {
    %c0_i32 = arith.constant 0 : i32
    %c0_i32_0 = arith.constant 0 : i32
    return %arg0, %c0_i32 : i32, i32
  }
  func.func @transform_1(%arg0: i32, %arg1: i32) -> (i32, i32) {
    %c0_i32 = arith.constant 0 : i32
    %c0_i32_0 = arith.constant 0 : i32
    return %c0_i32, %arg1 : i32, i32
  }
  func.func @transform_2(%arg0: i32, %arg1: i32) -> (i32, i32) {
    %c0_i32 = arith.constant 0 : i32
    %c0_i32_0 = arith.constant 0 : i32
    return %c0_i32, %arg1 : i32, i32
  }
  func.func @transform_3(%arg0: i32, %arg1: i32) -> (i32, i32) {
    %c0_i32 = arith.constant 0 : i32
    return %arg0, %arg1 : i32, i32
  }
}

</mosaic_0001>

<llo_original>
// kernel: tpu_custom_call.1
$region0: #{tpu_custom_call.1}
  #allocation0 [shape = 'u32[]', space=smem, size = 0x4, offset = 0x4, fixed_abs, tag = 'smem constant byte address 0x4 - core index']
  #allocation1 [shape = 'u32[144,128]{1,0:T(1,128)}', space=vmem, size = 0x12000, scoped, tag = 'internal scratch']
  %s0 = inlined_call_operand.hbm [shape: f32[8,128], index: 0, kind: input, shape index: {}]
  %s1 = inlined_call_operand.hbm [shape: f32[128,128], index: 1, kind: input, shape index: {}]
  %s2 = inlined_call_operand.vmem [shape: f32[1,128], index: 2, kind: input, shape index: {}]
  %s3 = inlined_call_operand.hbm [shape: f32[8,128], index: 3, kind: output, shape index: {}]
  %s4 = sld [smem:[#allocation0]]
  $region30: #{tpu_custom_call.1} parent=0
    _
  %s6 = ssub.s32 1, %s4
  %s7 = scalar_select 0, %s6, %s4
  $region1: #{tpu_custom_call.1} parent=0
    #allocation2 [shape = 'u8[4096]{0}', space=vmem, size = 0x1000, scoped, tag = 'input window, operand 0, single buffered']
    #allocation3 [shape = 's32[1]{0}', space=sflag, size = 0x4, scoped, tag = 'scoped memory for tpu_custom_call.1']
    #allocation4 [shape = 's32[1]{0}', space=sflag, size = 0x4, scoped, tag = 'scoped memory for tpu_custom_call.1']
    #allocation5 [shape = 'u8[65536]{0}', space=vmem, size = 0x10000, scoped, tag = 'input window, operand 1, single buffered']
    #allocation6 [shape = 's32[1]{0}', space=sflag, size = 0x4, scoped, tag = 'scoped memory for tpu_custom_call.1']
    #allocation7 [shape = 'u8[4096]{0}', space=vmem, size = 0x1000, scoped, tag = 'output window, operand 0, single buffered']
    %8 = vsyncpa [#allocation3], 0
    %9 = vsyncpa [#allocation6], 0
    %10 = vsyncpa [#allocation4], 0
    // Predicated region
    $region2: #{tpu_custom_call.1} parent=1 // pred_check
      _
    $region3: #{tpu_custom_call.1} parent=1 // pred_check_branch
      %12 = sbr.rel (0) target = $region5
    $region4: #{tpu_custom_call.1} parent=1 // pred_region
      %s14 = ssub.s32 128, 128
      %15 = vsyncadd [#allocation3], %s14
      %s17 = sshll.u32 [#allocation2], 4
      %s18 = int_to_ptr.vmem [resolvable:$true] %s17
      %20 = dma.hbm_to_vmem [thread:$0]  %s0, 128, %s18, [#allocation3]
    $region5: #{tpu_custom_call.1} parent=1 // pred_fallthru
      _
    // Predicated region
    $region6: #{tpu_custom_call.1} parent=1 // pred_check
      _
    $region7: #{tpu_custom_call.1} parent=1 // pred_check_branch
      %22 = sbr.rel (0) target = $region9
    $region8: #{tpu_custom_call.1} parent=1 // pred_region
      %s24 = ssub.s32 2048, 2048
      %25 = vsyncadd [#allocation6], %s24
      %s26 = sshll.u32 [#allocation5], 4
      %s27 = int_to_ptr.vmem [resolvable:$true] %s26
      %32 = dma.hbm_to_vmem [thread:$0]  %s1, 2048, %s27, [#allocation6], 128, 128, 8
    $region9: #{tpu_custom_call.1} parent=1 // pred_fallthru
      _
    // Predicated region
    $region10: #{tpu_custom_call.1} parent=1 // pred_check
      _
    $region11: #{tpu_custom_call.1} parent=1 // pred_check_branch
      %34 = sbr.rel (0) target = $region13
    $region12: #{tpu_custom_call.1} parent=1 // pred_region
      _
    $region13: #{tpu_custom_call.1} parent=1 // pred_fallthru
      _
    // Predicated region
    $region14: #{tpu_custom_call.1} parent=1 // pred_check
      _
    $region15: #{tpu_custom_call.1} parent=1 // pred_check_branch
      %36 = sbr.rel (0) target = $region17
    $region16: #{tpu_custom_call.1} parent=1 // pred_region
      %37 = dma.done [#allocation3], 128
    $region17: #{tpu_custom_call.1} parent=1 // pred_fallthru
      _
    // Predicated region
    $region18: #{tpu_custom_call.1} parent=1 // pred_check
      _
    $region19: #{tpu_custom_call.1} parent=1 // pred_check_branch
      %39 = sbr.rel (0) target = $region21
    $region20: #{tpu_custom_call.1} parent=1 // pred_region
      %40 = dma.done [#allocation6], 2048
    $region21: #{tpu_custom_call.1} parent=1 // pred_fallthru
      _
    %v41 = vld [vmem:[#allocation2] sm:$0xff]
    %v42 = vld [vmem:[#allocation5] sm:$0xff]
    %v43 = vld [vmem:[#allocation5 + $0x8] sm:$0xff]
    %v44 = vld [vmem:[#allocation5 + $0x10] sm:$0xff]
    %v45 = vld [vmem:[#allocation5 + $0x18] sm:$0xff]
    %v46 = vld [vmem:[#allocation5 + $0x20] sm:$0xff]
    %v47 = vld [vmem:[#allocation5 + $0x28] sm:$0xff]
    %v48 = vld [vmem:[#allocation5 + $0x30] sm:$0xff]
    %v49 = vld [vmem:[#allocation5 + $0x38] sm:$0xff]
    %v50 = vld [vmem:[#allocation5 + $0x40] sm:$0xff]
    %v51 = vld [vmem:[#allocation5 + $0x48] sm:$0xff]
    %v52 = vld [vmem:[#allocation5 + $0x50] sm:$0xff]
    %v53 = vld [vmem:[#allocation5 + $0x58] sm:$0xff]
    %v54 = vld [vmem:[#allocation5 + $0x60] sm:$0xff]
    %v55 = vld [vmem:[#allocation5 + $0x68] sm:$0xff]
    %v56 = vld [vmem:[#allocation5 + $0x70] sm:$0xff]
    %v57 = vld [vmem:[#allocation5 + $0x78] sm:$0xff]
    %v58 = vld [vmem:[%s2] sm:$0x1]
    %v60 = vlaneseq
    %v61 = vshrl.u32 %v60, 7
    %v62 = vsub.s32 0, %v61
    %v63 = vrot.slane %v58, %v62
    %65 = vmatprep.subr.mxu0 0.0
    %66 = vmatpush1.msra.mxu0 %v57
    %67 = vmatprep.subr.mxu0 0.0
    %68 = vmatpush1.msra.mxu0 %v56
    %69 = vmatprep.subr.mxu0 0.0
    %70 = vmatpush1.msra.mxu0 %v55
    %71 = vmatprep.subr.mxu0 0.0
    %72 = vmatpush1.msra.mxu0 %v54
    %73 = vmatprep.subr.mxu0 0.0
    %74 = vmatpush1.msra.mxu0 %v53
    %75 = vmatprep.subr.mxu0 0.0
    %76 = vmatpush1.msra.mxu0 %v52
    %77 = vmatprep.subr.mxu0 0.0
    %78 = vmatpush1.msra.mxu0 %v51
    %79 = vmatprep.subr.mxu0 0.0
    %80 = vmatpush1.msra.mxu0 %v50
    %81 = vmatprep.subr.mxu0 0.0
    %82 = vmatpush1.msra.mxu0 %v49
    %83 = vmatprep.subr.mxu0 0.0
    %84 = vmatpush1.msra.mxu0 %v48
    %85 = vmatprep.subr.mxu0 0.0
    %86 = vmatpush1.msra.mxu0 %v47
    %87 = vmatprep.subr.mxu0 0.0
    %88 = vmatpush1.msra.mxu0 %v46
    %89 = vmatprep.subr.mxu0 0.0
    %90 = vmatpush1.msra.mxu0 %v45
    %91 = vmatprep.subr.mxu0 0.0
    %92 = vmatpush1.msra.mxu0 %v44
    %93 = vmatprep.subr.mxu0 0.0
    %94 = vmatpush1.msra.mxu0 %v43
    %95 = vmatprep.subr.mxu0 0.0
    %96 = vmatpush1.msra.mxu0 %v42
    %97 = vmatprep.subr.mxu0 0.0
    %98 = vmatpush2.msra.mxu0 0.0
    %99 = vmatprep.subr.mxu0 0.0
    %100 = vmatpush2.msra.mxu0 0.0
    %101 = vmatprep.subr.mxu0 0.0
    %102 = vmatpush2.msra.mxu0 0.0
    %103 = vmatprep.subr.mxu0 0.0
    %104 = vmatpush2.msra.mxu0 0.0
    %105 = vmatprep.subr.mxu0 0.0
    %106 = vmatpush2.msra.mxu0 0.0
    %107 = vmatprep.subr.mxu0 0.0
    %108 = vmatpush2.msra.mxu0 0.0
    %109 = vmatprep.subr.mxu0 0.0
    %110 = vmatpush2.msra.mxu0 0.0
    %111 = vmatprep.subr.mxu0 0.0
    %112 = vmatpush2.msra.mxu0 0.0
    %113 = vmatprep.subr.mxu0 0.0
    %114 = vmatpush2.msra.mxu0 0.0
    %115 = vmatprep.subr.mxu0 0.0
    %116 = vmatpush2.msra.mxu0 0.0
    %117 = vmatprep.subr.mxu0 0.0
    %118 = vmatpush2.msra.mxu0 0.0
    %119 = vmatprep.subr.mxu0 0.0
    %120 = vmatpush2.msra.mxu0 0.0
    %121 = vmatprep.subr.mxu0 0.0
    %122 = vmatpush2.msra.mxu0 0.0
    %123 = vmatprep.subr.mxu0 0.0
    %124 = vmatpush2.msra.mxu0 0.0
    %125 = vmatprep.subr.mxu0 0.0
    %126 = vmatpush2.msra.mxu0 0.0
    %127 = vmatprep.subr.mxu0 0.0
    %128 = vmatpush2.msra.mxu0 0.0
    %129 = vmatprep.mubr.f32.mxu0 0.0
    %130 = vmatmul.mubr.f32.gmra.mxu0 %v41
    %v131 = vpop.f32.mrf.mxu0
    %v132 = vadd.f32 %v63, %v131
    %v133 = vpop.f32.mrf.mxu0
    %134 = vdwg.mxu0
    %135 = vst [vmem:[#allocation7] sm:$0xff] %v132
    // Predicated region
    $region22: #{tpu_custom_call.1} parent=1 // pred_check
      _
    $region23: #{tpu_custom_call.1} parent=1 // pred_check_branch
      %137 = sbr.rel (0) target = $region25
    $region24: #{tpu_custom_call.1} parent=1 // pred_region
      %s139 = ssub.s32 128, 128
      %140 = vsyncadd [#allocation4], %s139
      %s142 = sshll.u32 [#allocation7], 4
      %s143 = int_to_ptr.vmem [resolvable:$true] %s142
      %145 = dma.vmem_to_hbm [thread:$0]  %s143, 128, %s3, [#allocation4]
    $region25: #{tpu_custom_call.1} parent=1 // pred_fallthru
      _
    // Predicated region
    $region26: #{tpu_custom_call.1} parent=1 // pred_check
      _
    $region27: #{tpu_custom_call.1} parent=1 // pred_check_branch
      %147 = sbr.rel (0) target = $region29
    $region28: #{tpu_custom_call.1} parent=1 // pred_region
      %148 = dma.done [#allocation4], 128
    $region29: #{tpu_custom_call.1} parent=1 // pred_fallthru
      _
    %149 = vsyncpa [#allocation3], 1
    %150 = vsyncpa [#allocation6], 1
    %151 = vsyncpa [#allocation4], 1

</llo_original>
